<compile_context>
chip_gen: v7x
topology: tpu7x:2x2x1
jax: 0.10.0
libtpu: 0.0.40
codegen_flags: <defaults>
</compile_context>

<pallas_src>
import functools

import jax
import jax.numpy as jnp
from jax.experimental import pallas as pl
from jax.experimental.pallas import tpu as pltpu


def _round_up(x, m):
    return ((x + m - 1) // m) * m


def _pad_channels(c):
    # <=128: pad to 128 (MXU minimum lane width); >128: pad to multiples of 256
    # so the 2x256^2 MXU on v6e/v7x stays fully fed.
    return 128 if c <= 128 else _round_up(c, 256)


# ----------------------------- Pallas kernel ------------------------------ #

def sage_conv_kernel(nz_ref, kf_ref, a_ref, x_ref, xt_ref, wl_ref, wr_ref,
                     b_ref, invd_ref, o_ref, agg_ref, *, nk, apply_relu):
    """One fused SAGEConv layer, tiled over (row tile i, source tile k).

    nz_ref  : [ni*nk]          int32 SMEM flags: A tile (i,k) has any nonzero
    kf_ref  : [ni*nk]          int32 SMEM block index actually fetched at (i,k)
    a_ref   : [tm, tk]         bf16 edge-count tile of A[dst, src]
    x_ref   : [tk, Cin_p]      bf16 source-feature tile
    xt_ref  : [tm, Cin_p]      bf16 target-feature tile (resident across k)
    wl_ref  : [Cin_p, Cout_p]  bf16 Wl^T (neighbor projection)
    wr_ref  : [Cin_p, Cout_p]  bf16 Wr^T (root projection)
    b_ref   : [1, Cout_p]      f32 bias
    invd_ref: [tm, 1]          f32 1/deg (clamped at 1) per destination row
    o_ref   : [tm, Cout_p]     output tile (written only at last k step)
    agg_ref : [tm, Cin_p]      f32 accumulator scratch for A_counts @ X
    """
    i = pl.program_id(0)
    k = pl.program_id(1)

    @pl.when(k == 0)
    def _():
        agg_ref[...] = jnp.zeros_like(agg_ref)

    # Block-sparse neighbor aggregation: only accumulate tiles that contain edges.
    @pl.when(nz_ref[i * nk + k] > 0)
    def _():
        agg_ref[...] += jnp.dot(a_ref[...], x_ref[...],
                                preferred_element_type=jnp.float32)

    @pl.when(k == nk - 1)
    def _():
        # f32 mean normalization, then two MXU dots (no concatenate temporary).
        aggn = (agg_ref[...] * invd_ref[...]).astype(wl_ref.dtype)
        out = jnp.dot(aggn, wl_ref[...], preferred_element_type=jnp.float32)
        out = out + jnp.dot(xt_ref[...], wr_ref[...],
                            preferred_element_type=jnp.float32)
        out = out + b_ref[...]
        if apply_relu:
            out = jnp.maximum(out, 0.0)
        o_ref[...] = out.astype(o_ref.dtype)


def sage_conv_pallas(counts, inv_deg, X, Xt, Wl, Wr, b, apply_relu, out_dtype):
    """Fused SAGEConv layer: relu?(((counts @ X) * inv_deg) @ Wl^T + Xt @ Wr^T + b)."""
    Nt, Ns = counts.shape
    Cin = X.shape[1]
    Cout = Wl.shape[0]

    Cin_p = _pad_channels(Cin)
    Cout_p = _pad_channels(Cout)
    out_bytes = jnp.dtype(out_dtype).itemsize

    # Row tile: up to 256, but keep >= 2 row tiles whenever possible so the
    # "parallel" axis can shard across both TensorCores on v7x.
    nt8 = _round_up(Nt, 8)
    tm_target = 256 if nt8 >= 512 else 128
    tm = max(8, min(tm_target, _round_up(-(-nt8 // 2), 8)))
    Nt_p = _round_up(Nt, tm)
    ni = Nt_p // tm

    # Source tile: as large as a conservative cross-generation VMEM budget allows
    # (amortizes the ~0.35us per-grid-step overhead).
    budget = 20 * 1024 * 1024

    def _footprint(c):
        return (2 * tm * c * 2              # A tile (bf16, double-buffered)
                + 2 * c * Cin_p * 2         # X tile
                + 2 * tm * Cin_p * 2        # Xt tile
                + 2 * 2 * Cin_p * Cout_p * 2  # Wl^T + Wr^T (conservatively x2)
                + 2 * Cout_p * 4            # bias
                + 2 * tm * 4                # inv_deg
                + 2 * tm * Cout_p * out_bytes  # output tile
                + tm * Cin_p * 4)           # f32 agg scratch

    ns128 = _round_up(Ns, 128)
    tk = min(128, ns128)
    for cand in (2048, 1024, 512, 256, 128):
        c = min(cand, ns128)
        if _footprint(c) <= budget:
            tk = c
            break
    Ns_p = _round_up(Ns, tk)
    nk = Ns_p // tk

    # --- padded operands (zero padding is mathematically exact) -------------
    counts_p = jnp.zeros((Nt_p, Ns_p), jnp.float32).at[:Nt, :Ns].set(counts)
    A_p = counts_p.astype(jnp.bfloat16)     # integer counts: exact in bf16 (<256)
    X_p = jnp.zeros((Ns_p, Cin_p), jnp.bfloat16).at[:Ns, :Cin].set(
        X.astype(jnp.bfloat16))
    Xt_p = jnp.zeros((Nt_p, Cin_p), jnp.bfloat16).at[:Nt, :Cin].set(
        Xt.astype(jnp.bfloat16))
    WlT = jnp.zeros((Cin_p, Cout_p), jnp.float32).at[:Cin, :Cout].set(
        jnp.asarray(Wl, jnp.float32).T).astype(jnp.bfloat16)
    WrT = jnp.zeros((Cin_p, Cout_p), jnp.float32).at[:Cin, :Cout].set(
        jnp.asarray(Wr, jnp.float32).T).astype(jnp.bfloat16)
    b_p = jnp.zeros((1, Cout_p), jnp.float32).at[0, :Cout].set(
        jnp.asarray(b, jnp.float32))
    invd_p = jnp.zeros((Nt_p, 1), jnp.float32).at[:Nt, 0].set(
        jnp.asarray(inv_deg, jnp.float32))

    # --- block-sparsity maps (scalar prefetch) ------------------------------
    # nz[i,k]: tile has any edge.  kf[i,k]: block index to fetch at step (i,k);
    # for zero tiles we repeat the previously fetched block so Pallas skips the DMA.
    nz2d = counts_p.reshape(ni, tm, nk, tk).sum(axis=(1, 3)) > 0.0
    karange = jnp.arange(nk, dtype=jnp.int32)
    kf2d = jax.lax.cummax(jnp.where(nz2d, karange[None, :], -1), axis=1)
    kf2d = jnp.maximum(kf2d, 0).astype(jnp.int32)
    nz_flat = nz2d.astype(jnp.int32).reshape(-1)
    kf_flat = kf2d.reshape(-1)

    # --- pallas_call ---------------------------------------------------------
    flops = 2 * Nt_p * Ns_p * Cin_p + 2 * 2 * Nt_p * Cin_p * Cout_p
    bytes_accessed = int(A_p.size * 2 + X_p.size * 2 + Xt_p.size * 2
                         + (WlT.size + WrT.size) * 2 + b_p.size * 4
                         + invd_p.size * 4 + Nt_p * Cout_p * out_bytes)

    kernel = functools.partial(sage_conv_kernel, nk=nk, apply_relu=apply_relu)

    grid_spec = pltpu.PrefetchScalarGridSpec(
        num_scalar_prefetch=2,
        grid=(ni, nk),
        in_specs=[
            pl.BlockSpec((tm, tk),
                         lambda i, k, nz, kf: (i, kf[i * nk + k])),     # A tile
            pl.BlockSpec((tk, Cin_p),
                         lambda i, k, nz, kf: (kf[i * nk + k], 0)),     # X tile
            pl.BlockSpec((tm, Cin_p), lambda i, k, nz, kf: (i, 0)),     # Xt
            pl.BlockSpec((Cin_p, Cout_p), lambda i, k, nz, kf: (0, 0)),  # Wl^T
            pl.BlockSpec((Cin_p, Cout_p), lambda i, k, nz, kf: (0, 0)),  # Wr^T
            pl.BlockSpec((1, Cout_p), lambda i, k, nz, kf: (0, 0)),     # bias
            pl.BlockSpec((tm, 1), lambda i, k, nz, kf: (i, 0)),         # 1/deg
        ],
        out_specs=pl.BlockSpec((tm, Cout_p), lambda i, k, nz, kf: (i, 0)),
        scratch_shapes=[pltpu.VMEM((tm, Cin_p), jnp.float32)],
    )

    out_p = pl.pallas_call(
        kernel,
        out_shape=jax.ShapeDtypeStruct((Nt_p, Cout_p), out_dtype),
        grid_spec=grid_spec,
        compiler_params=pltpu.CompilerParams(
            dimension_semantics=("parallel", "arbitrary"),
            vmem_limit_bytes=32 * 1024 * 1024),
        cost_estimate=pl.CostEstimate(
            flops=flops, transcendentals=0, bytes_accessed=bytes_accessed),
    )(nz_flat, kf_flat, A_p, X_p, Xt_p, WlT, WrT, b_p, invd_p)

    return out_p[:Nt, :Cout]


# ------------------------------- JAX glue ---------------------------------- #

def build_counts_and_invdeg(edge_index, num_src, num_dst):
    """Dense edge-count matrix counts[dst, src] and f32 1/deg (clamped at 1;
    matches PyG scatter-mean behavior for isolated target nodes)."""
    src = edge_index[0]
    dst = edge_index[1]
    counts = jnp.zeros((num_dst, num_src), jnp.float32).at[dst, src].add(1.0)
    deg = counts.sum(axis=1)
    inv_deg = 1.0 / jnp.maximum(deg, 1.0)
    return counts, inv_deg


def init_sage_params(key, in_channels, hidden_channels, num_layers):
    """Deterministic parameter init matching SAGEConv shapes:
       lin_l: weight [hidden, in], bias [hidden]; lin_r: weight [hidden, in]."""
    params = []
    cin = in_channels
    for _ in range(num_layers):
        key, k1, k2, k3 = jax.random.split(key, 4)
        scale = 1.0 / jnp.sqrt(jnp.float32(cin))
        Wl = jax.random.uniform(k1, (hidden_channels, cin), jnp.float32, -scale, scale)
        Wr = jax.random.uniform(k2, (hidden_channels, cin), jnp.float32, -scale, scale)
        b = jax.random.uniform(k3, (hidden_channels,), jnp.float32, -scale, scale)
        params.append((Wl, Wr, b))
        cin = hidden_channels
    return params


def sage_forward(x, adjs, params):
    """SAGE.forward (eval mode). adjs: list of (edge_index[2,E], size=(n_src, n_dst))."""
    num_layers = len(params)
    for i, (edge_index, size) in enumerate(adjs):
        n_dst = size[1]
        x_target = x[:n_dst]
        counts, inv_deg = build_counts_and_invdeg(edge_index, x.shape[0], n_dst)
        Wl, Wr, b = params[i]
        last = (i == num_layers - 1)
        # Intermediate activations in bf16 (they feed the next bf16 MXU pass
        # anyway); final layer in f32.
        x = sage_conv_pallas(counts, inv_deg, x, x_target, Wl, Wr, b,
                             apply_relu=not last,
                             out_dtype=jnp.float32 if last else jnp.bfloat16)
    return x


def sage_forward_ref(x, adjs, params):
    """Pure-JAX f32 reference for correctness checking."""
    num_layers = len(params)
    for i, (edge_index, size) in enumerate(adjs):
        n_dst = size[1]
        x_target = x[:n_dst]
        counts, inv_deg = build_counts_and_invdeg(edge_index, x.shape[0], n_dst)
        A = counts * inv_deg[:, None]
        Wl, Wr, b = params[i]
        out = (A @ x) @ Wl.T + b[None, :] + x_target @ Wr.T
        if i != num_layers - 1:
            out = jnp.maximum(out, 0.0)
        x = out
    return x


# --------------------------------- main ------------------------------------ #

if __name__ == "__main__":
    key = jax.random.PRNGKey(0)

    in_channels, hidden_channels, num_layers = 8, 32, 2
    n0, n1, n2 = 16, 8, 4            # sampled node counts per hop
    e0, e1 = 32, 16                  # edges per sampled bipartite layer

    key, kx, ks0, kd0, ks1, kd1, kp = jax.random.split(key, 7)
    x = jax.random.normal(kx, (n0, in_channels), jnp.float32)

    # adjs: (edge_index, size) with src indices < size[0], dst indices < size[1]
    ei0 = jnp.stack([jax.random.randint(ks0, (e0,), 0, n0, jnp.int32),
                     jax.random.randint(kd0, (e0,), 0, n1, jnp.int32)])
    ei1 = jnp.stack([jax.random.randint(ks1, (e1,), 0, n1, jnp.int32),
                     jax.random.randint(kd1, (e1,), 0, n2, jnp.int32)])
    adjs = [(ei0, (n0, n1)), (ei1, (n1, n2))]

    params = init_sage_params(kp, in_channels, hidden_channels, num_layers)

    out = sage_forward(x, adjs, params)
    out = jax.block_until_ready(out)

    ref = sage_forward_ref(x, adjs, params)
    assert out.shape == (n2, hidden_channels), out.shape
    # Tolerance accommodates bf16 MXU inputs / bf16 intermediate activations
    # (f32 accumulation, f32 mean normalization).
    assert jnp.allclose(out, ref, atol=2e-2, rtol=2e-2), "mismatch vs JAX reference"

    print("KERNEL_OK")
</pallas_src>

<mosaic_0001>
module attributes {stable_mosaic.version = 11 : i64} {
  func.func @sage_conv_kernel(%arg0: i32, %arg1: i32, %arg2: memref<1xi32, #tpu.memory_space<smem>>, %arg3: memref<1xi32, #tpu.memory_space<smem>>, %arg4: memref<8x128xbf16, #tpu.memory_space<vmem>>, %arg5: memref<128x128xbf16, #tpu.memory_space<vmem>>, %arg6: memref<8x128xbf16, #tpu.memory_space<vmem>>, %arg7: memref<128x128xbf16, #tpu.memory_space<vmem>>, %arg8: memref<128x128xbf16, #tpu.memory_space<vmem>>, %arg9: memref<1x128xf32, #tpu.memory_space<vmem>>, %arg10: memref<8x1xf32, #tpu.memory_space<vmem>>, %arg11: memref<8x128xbf16, #tpu.memory_space<vmem>>, %arg12: memref<8x128xf32, #tpu.memory_space<vmem>>) attributes {dimension_semantics = [#tpu.dimension_semantics<parallel>, #tpu.dimension_semantics<arbitrary>], iteration_bounds = array<i64: 1, 1>, scalar_prefetch = 2 : i64, scratch_operands = 1 : i64, tpu.core_type = #tpu.core_type<tc>, window_params = [{transform_indices = @transform_0, window_bounds = array<i64: 8, 128>}, {transform_indices = @transform_1, window_bounds = array<i64: 128, 128>}, {transform_indices = @transform_2, window_bounds = array<i64: 8, 128>}, {pipeline_mode = #tpu.pipeline_mode<synchronous>, transform_indices = @transform_3, window_bounds = array<i64: 128, 128>}, {pipeline_mode = #tpu.pipeline_mode<synchronous>, transform_indices = @transform_4, window_bounds = array<i64: 128, 128>}, {pipeline_mode = #tpu.pipeline_mode<synchronous>, transform_indices = @transform_5, window_bounds = array<i64: 1, 128>}, {transform_indices = @transform_6, window_bounds = array<i64: 8, 1>}, {transform_indices = @transform_7, window_bounds = array<i64: 8, 128>}]} {
    %c0_i32 = arith.constant 0 : i32
    %0 = arith.cmpi eq, %arg1, %c0_i32 : i32
    %1 = arith.extui %0 : i1 to i32
    %c0_i32_0 = arith.constant 0 : i32
    %2 = arith.cmpi ne, %1, %c0_i32_0 : i32
    scf.if %2 {
      %cst = arith.constant 0.000000e+00 : f32
      %13 = vector.broadcast %cst : f32 to vector<8x128xf32>
      %c0 = arith.constant 0 : index
      %c0_5 = arith.constant 0 : index
      %14 = vector.load %arg12[%c0, %c0_5] : memref<8x128xf32, #tpu.memory_space<vmem>>, vector<8x128xf32>
      tpu.vector_store %arg12[%c0, %c0_5], %13 {strides = array<i32>} : memref<8x128xf32, #tpu.memory_space<vmem>>, vector<8x128xf32>,
    } else {
    }
    %c1_i32 = arith.constant 1 : i32
    %3 = arith.muli %arg0, %c1_i32 : i32
    %4 = arith.addi %3, %arg1 : i32
    %5 = arith.index_cast %4 : i32 to index
    %6 = memref.load %arg2[%5] : memref<1xi32, #tpu.memory_space<smem>>
    %c0_i32_1 = arith.constant 0 : i32
    %7 = arith.cmpi sgt, %6, %c0_i32_1 : i32
    %8 = arith.extui %7 : i1 to i32
    %c0_i32_2 = arith.constant 0 : i32
    %9 = arith.cmpi ne, %8, %c0_i32_2 : i32
    scf.if %9 {
      %c0 = arith.constant 0 : index
      %c0_5 = arith.constant 0 : index
      %13 = vector.load %arg12[%c0, %c0_5] : memref<8x128xf32, #tpu.memory_space<vmem>>, vector<8x128xf32>
      %c0_6 = arith.constant 0 : index
      %c0_7 = arith.constant 0 : index
      %14 = vector.load %arg4[%c0_6, %c0_7] : memref<8x128xbf16, #tpu.memory_space<vmem>>, vector<8x128xbf16>
      %c0_8 = arith.constant 0 : index
      %c0_9 = arith.constant 0 : index
      %15 = vector.load %arg5[%c0_8, %c0_9] : memref<128x128xbf16, #tpu.memory_space<vmem>>, vector<128x128xbf16>
      %cst = arith.constant dense<0.000000e+00> : vector<8x128xf32>
      %16 = tpu.matmul %14, %15, %cst {dimension_numbers = #tpu.dot_dimension_numbers<[1], [0], [0], [1], [0, 0, 1, 1], [], []>} : vector<8x128xbf16>, vector<128x128xbf16>, vector<8x128xf32> -> vector<8x128xf32>
      %17 = arith.addf %13, %16 : vector<8x128xf32>
      %c0_10 = arith.constant 0 : index
      %c0_11 = arith.constant 0 : index
      %18 = vector.load %arg12[%c0_10, %c0_11] : memref<8x128xf32, #tpu.memory_space<vmem>>, vector<8x128xf32>
      tpu.vector_store %arg12[%c0_10, %c0_11], %17 {strides = array<i32>} : memref<8x128xf32, #tpu.memory_space<vmem>>, vector<8x128xf32>,
    } else {
    }
    %c0_i32_3 = arith.constant 0 : i32
    %10 = arith.cmpi eq, %arg1, %c0_i32_3 : i32
    %11 = arith.extui %10 : i1 to i32
    %c0_i32_4 = arith.constant 0 : i32
    %12 = arith.cmpi ne, %11, %c0_i32_4 : i32
    scf.if %12 {
      %c0 = arith.constant 0 : index
      %c0_5 = arith.constant 0 : index
      %13 = vector.load %arg12[%c0, %c0_5] : memref<8x128xf32, #tpu.memory_space<vmem>>, vector<8x128xf32>
      %c0_6 = arith.constant 0 : index
      %c0_7 = arith.constant 0 : index
      %14 = vector.load %arg10[%c0_6, %c0_7] : memref<8x1xf32, #tpu.memory_space<vmem>>, vector<8x1xf32>
      %15 = vector.broadcast %14 : vector<8x1xf32> to vector<8x128xf32>
      %16 = arith.mulf %13, %15 : vector<8x128xf32>
      %17 = arith.truncf %16 : vector<8x128xf32> to vector<8x128xbf16>
      %c0_8 = arith.constant 0 : index
      %c0_9 = arith.constant 0 : index
      %18 = vector.load %arg7[%c0_8, %c0_9] : memref<128x128xbf16, #tpu.memory_space<vmem>>, vector<128x128xbf16>
      %cst = arith.constant dense<0.000000e+00> : vector<8x128xf32>
      %19 = tpu.matmul %17, %18, %cst {dimension_numbers = #tpu.dot_dimension_numbers<[1], [0], [0], [1], [0, 0, 1, 1], [], []>} : vector<8x128xbf16>, vector<128x128xbf16>, vector<8x128xf32> -> vector<8x128xf32>
      %c0_10 = arith.constant 0 : index
      %c0_11 = arith.constant 0 : index
      %20 = vector.load %arg6[%c0_10, %c0_11] : memref<8x128xbf16, #tpu.memory_space<vmem>>, vector<8x128xbf16>
      %c0_12 = arith.constant 0 : index
      %c0_13 = arith.constant 0 : index
      %21 = vector.load %arg8[%c0_12, %c0_13] : memref<128x128xbf16, #tpu.memory_space<vmem>>, vector<128x128xbf16>
      %cst_14 = arith.constant dense<0.000000e+00> : vector<8x128xf32>
      %22 = tpu.matmul %20, %21, %cst_14 {dimension_numbers = #tpu.dot_dimension_numbers<[1], [0], [0], [1], [0, 0, 1, 1], [], []>} : vector<8x128xbf16>, vector<128x128xbf16>, vector<8x128xf32> -> vector<8x128xf32>
      %23 = arith.addf %19, %22 : vector<8x128xf32>
      %c0_15 = arith.constant 0 : index
      %c0_16 = arith.constant 0 : index
      %24 = vector.load %arg9[%c0_15, %c0_16] : memref<1x128xf32, #tpu.memory_space<vmem>>, vector<1x128xf32>
      %25 = vector.broadcast %24 : vector<1x128xf32> to vector<8x128xf32>
      %26 = arith.addf %23, %25 : vector<8x128xf32>
      %cst_17 = arith.constant 0.000000e+00 : f32
      %27 = vector.broadcast %cst_17 : f32 to vector<8x128xf32>
      %28 = arith.maximumf %26, %27 : vector<8x128xf32>
      %29 = arith.truncf %28 : vector<8x128xf32> to vector<8x128xbf16>
      %c0_18 = arith.constant 0 : index
      %c0_19 = arith.constant 0 : index
      %30 = vector.load %arg11[%c0_18, %c0_19] : memref<8x128xbf16, #tpu.memory_space<vmem>>, vector<8x128xbf16>
      tpu.vector_store %arg11[%c0_18, %c0_19], %29 {strides = array<i32>} : memref<8x128xbf16, #tpu.memory_space<vmem>>, vector<8x128xbf16>,
    } else {
    }
    return
  }
  func.func @transform_0(%arg0: i32, %arg1: i32, %arg2: memref<1xi32, #tpu.memory_space<smem>>, %arg3: memref<1xi32, #tpu.memory_space<smem>>) -> (i32, i32) {
    %c1_i32 = arith.constant 1 : i32
    %0 = arith.muli %arg0, %c1_i32 : i32
    %1 = arith.addi %0, %arg1 : i32
    %2 = arith.index_cast %1 : i32 to index
    %3 = memref.load %arg3[%2] : memref<1xi32, #tpu.memory_space<smem>>
    %c0_i32 = arith.constant 0 : i32
    return %arg0, %3 : i32, i32
  }
  func.func @transform_1(%arg0: i32, %arg1: i32, %arg2: memref<1xi32, #tpu.memory_space<smem>>, %arg3: memref<1xi32, #tpu.memory_space<smem>>) -> (i32, i32) {
    %c1_i32 = arith.constant 1 : i32
    %0 = arith.muli %arg0, %c1_i32 : i32
    %1 = arith.addi %0, %arg1 : i32
    %2 = arith.index_cast %1 : i32 to index
    %3 = memref.load %arg3[%2] : memref<1xi32, #tpu.memory_space<smem>>
    %c0_i32 = arith.constant 0 : i32
    %c0_i32_0 = arith.constant 0 : i32
    return %3, %c0_i32 : i32, i32
  }
  func.func @transform_2(%arg0: i32, %arg1: i32, %arg2: memref<1xi32, #tpu.memory_space<smem>>, %arg3: memref<1xi32, #tpu.memory_space<smem>>) -> (i32, i32) {
    %c0_i32 = arith.constant 0 : i32
    %c0_i32_0 = arith.constant 0 : i32
    return %arg0, %c0_i32 : i32, i32
  }
  func.func @transform_3(%arg0: i32, %arg1: i32, %arg2: memref<1xi32, #tpu.memory_space<smem>>, %arg3: memref<1xi32, #tpu.memory_space<smem>>) -> (i32, i32) {
    %c0_i32 = arith.constant 0 : i32
    %c0_i32_0 = arith.constant 0 : i32
    %c0_i32_1 = arith.constant 0 : i32
    return %c0_i32, %c0_i32_0 : i32, i32
  }
  func.func @transform_4(%arg0: i32, %arg1: i32, %arg2: memref<1xi32, #tpu.memory_space<smem>>, %arg3: memref<1xi32, #tpu.memory_space<smem>>) -> (i32, i32) {
    %c0_i32 = arith.constant 0 : i32
    %c0_i32_0 = arith.constant 0 : i32
    %c0_i32_1 = arith.constant 0 : i32
    return %c0_i32, %c0_i32_0 : i32, i32
  }
  func.func @transform_5(%arg0: i32, %arg1: i32, %arg2: memref<1xi32, #tpu.memory_space<smem>>, %arg3: memref<1xi32, #tpu.memory_space<smem>>) -> (i32, i32) {
    %c0_i32 = arith.constant 0 : i32
    %c0_i32_0 = arith.constant 0 : i32
    %c0_i32_1 = arith.constant 0 : i32
    return %c0_i32, %c0_i32_0 : i32, i32
  }
  func.func @transform_6(%arg0: i32, %arg1: i32, %arg2: memref<1xi32, #tpu.memory_space<smem>>, %arg3: memref<1xi32, #tpu.memory_space<smem>>) -> (i32, i32) {
    %c0_i32 = arith.constant 0 : i32
    %c0_i32_0 = arith.constant 0 : i32
    return %arg0, %c0_i32 : i32, i32
  }
  func.func @transform_7(%arg0: i32, %arg1: i32, %arg2: memref<1xi32, #tpu.memory_space<smem>>, %arg3: memref<1xi32, #tpu.memory_space<smem>>) -> (i32, i32) {
    %c0_i32 = arith.constant 0 : i32
    %c0_i32_0 = arith.constant 0 : i32
    return %arg0, %c0_i32 : i32, i32
  }
}

</mosaic_0001>

<llo_original>
// kernel: tpu_custom_call.1
$region0: #{tpu_custom_call.1}
  #allocation0 [shape = 'u32[]', space=smem, size = 0x4, offset = 0x4, fixed_abs, tag = 'smem constant byte address 0x4 - core index']
  #allocation1 [shape = 'u32[144,128]{1,0:T(1,128)}', space=vmem, size = 0x12000, scoped, tag = 'internal scratch']
  #allocation2 [shape = 'f32[8,128]{1,0:T(8,128)}', space=vmem, size = 0x1000, scoped, tag = 'scratch operand']
  #allocation3 [shape = 's32[1]{0}', space=sflag, size = 0x4, scoped, tag = 'scoped memory for tpu_custom_call.1']
  #allocation4 [shape = 's32[1]{0:T(128)S(6)}', space=smem, size = 0x200, scoped, tag = 'prefetched SMEM operand 0']
  #allocation5 [shape = 's32[1]{0:T(128)S(6)}', space=smem, size = 0x200, scoped, tag = 'prefetched SMEM operand 1']
  %s0 = inlined_call_operand.<no memory space> [shape: s32[1], index: 0, kind: input, shape index: {}]
  %s1 = inlined_call_operand.<no memory space> [shape: s32[1], index: 1, kind: input, shape index: {}]
  %s2 = inlined_call_operand.vmem [shape: bf16[8,128], index: 2, kind: input, shape index: {}]
  %s3 = inlined_call_operand.hbm [shape: bf16[128,128], index: 3, kind: input, shape index: {}]
  %s4 = inlined_call_operand.vmem [shape: bf16[8,128], index: 4, kind: input, shape index: {}]
  %s5 = inlined_call_operand.hbm [shape: bf16[128,128], index: 5, kind: input, shape index: {}]
  %s6 = inlined_call_operand.hbm [shape: bf16[128,128], index: 6, kind: input, shape index: {}]
  %s7 = inlined_call_operand.vmem [shape: f32[1,128], index: 7, kind: input, shape index: {}]
  %s8 = inlined_call_operand.vmem [shape: f32[8,1], index: 8, kind: input, shape index: {}]
  %s9 = inlined_call_operand.hbm [shape: bf16[8,128], index: 9, kind: output, shape index: {}]
  %s10 = sld [smem:[#allocation0]]
  $region62: #{tpu_custom_call.1} parent=0
    _
  %s12 = ssub.s32 1, %s10
  %s13 = scalar_select 0, %s12, %s10
  %14 = sst [smem:[#allocation4]] %s0
  %15 = sst [smem:[#allocation5]] %s1
  $region1: #{tpu_custom_call.1} parent=0
    #allocation6 [shape = 'u8[32768]{0}', space=vmem, size = 0x8000, scoped, tag = 'input window, operand 3, single buffered']
    #allocation7 [shape = 's32[1]{0}', space=sflag, size = 0x4, scoped, tag = 'scoped memory for tpu_custom_call.1']
    #allocation8 [shape = 's32[1]{0}', space=sflag, size = 0x4, scoped, tag = 'scoped memory for tpu_custom_call.1']
    #allocation9 [shape = 'u8[32768]{0}', space=vmem, size = 0x8000, scoped, tag = 'input window, operand 5, single buffered']
    #allocation10 [shape = 's32[1]{0}', space=sflag, size = 0x4, scoped, tag = 'scoped memory for tpu_custom_call.1']
    #allocation11 [shape = 'u8[32768]{0}', space=vmem, size = 0x8000, scoped, tag = 'input window, operand 6, single buffered']
    #allocation12 [shape = 'u8[2048]{0}', space=vmem, size = 0x800, scoped, tag = 'output window, operand 0, single buffered']
    %16 = vsyncpa [#allocation7], 0
    %17 = vsyncpa [#allocation10], 0
    %18 = vsyncpa [#allocation8], 0
    // Predicated region
    $region2: #{tpu_custom_call.1} parent=1 // pred_check
      _
    $region3: #{tpu_custom_call.1} parent=1 // pred_check_branch
      %20 = sbr.rel (0) target = $region5
    $region4: #{tpu_custom_call.1} parent=1 // pred_region
      %s21 = sadd.s32 0, 0
      %s22 = sld [smem:[#allocation5 + %s21]]
      %p23 = scmp.lt.s32.totalorder %s22, 0
      %s24 = scalar_select %p23, %s22, 0
      %s25 = smul.addr %s24, 4
      %s26 = scalar_lea.vmem %s2, %s25
      %s27 = sadd.s32 0, 0
      %s28 = sld [smem:[#allocation5 + %s27]]
    $region5: #{tpu_custom_call.1} parent=1 // pred_fallthru
      _
    // Predicated region
    $region6: #{tpu_custom_call.1} parent=1 // pred_check
      _
    $region7: #{tpu_custom_call.1} parent=1 // pred_check_branch
      %30 = sbr.rel (0) target = $region9
    $region8: #{tpu_custom_call.1} parent=1 // pred_region
      %s31 = sadd.s32 0, 0
      %s32 = sld [smem:[#allocation5 + %s31]]
      %s33 = smul.u32 16, %s32
      %s35 = ssub.s32 1024, 1024
      %36 = vsyncadd [#allocation7], %s35
      %s37 = smul.addr %s33, 64
      %s38 = scalar_lea.hbm %s3, %s37
      %s39 = sshll.u32 [#allocation6], 4
      %s40 = int_to_ptr.vmem [resolvable:$true] %s39
      %45 = dma.hbm_to_vmem [thread:$0]  %s38, 1024, %s40, [#allocation7], 64, 64, 4
    $region9: #{tpu_custom_call.1} parent=1 // pred_fallthru
      _
    // Predicated region
    $region10: #{tpu_custom_call.1} parent=1 // pred_check
      _
    $region11: #{tpu_custom_call.1} parent=1 // pred_check_branch
      %47 = sbr.rel (0) target = $region13
    $region12: #{tpu_custom_call.1} parent=1 // pred_region
      _
    $region13: #{tpu_custom_call.1} parent=1 // pred_fallthru
      _
    // Predicated region
    $region14: #{tpu_custom_call.1} parent=1 // pred_check
      _
    $region15: #{tpu_custom_call.1} parent=1 // pred_check_branch
      %49 = sbr.rel (0) target = $region17
    $region16: #{tpu_custom_call.1} parent=1 // pred_region
      %s51 = ssub.s32 1024, 1024
      %52 = vsyncadd [#allocation10], %s51
      %s53 = sshll.u32 [#allocation9], 4
      %s54 = int_to_ptr.vmem [resolvable:$true] %s53
      %59 = dma.hbm_to_vmem [thread:$0]  %s5, 1024, %s54, [#allocation10], 64, 64, 4
    $region17: #{tpu_custom_call.1} parent=1 // pred_fallthru
      _
    // Predicated region
    $region18: #{tpu_custom_call.1} parent=1 // pred_check
      _
    $region19: #{tpu_custom_call.1} parent=1 // pred_check_branch
      %61 = sbr.rel (0) target = $region21
    $region20: #{tpu_custom_call.1} parent=1 // pred_region
      %s63 = ssub.s32 1024, 1024
      %64 = vsyncadd [#allocation10], %s63
      %s65 = sshll.u32 [#allocation11], 4
      %s66 = int_to_ptr.vmem [resolvable:$true] %s65
      %71 = dma.hbm_to_vmem [thread:$0]  %s6, 1024, %s66, [#allocation10], 64, 64, 4
    $region21: #{tpu_custom_call.1} parent=1 // pred_fallthru
      _
    // Predicated region
    $region22: #{tpu_custom_call.1} parent=1 // pred_check
      _
    $region23: #{tpu_custom_call.1} parent=1 // pred_check_branch
      %73 = sbr.rel (0) target = $region25
    $region24: #{tpu_custom_call.1} parent=1 // pred_region
      _
    $region25: #{tpu_custom_call.1} parent=1 // pred_fallthru
      _
    // Predicated region
    $region26: #{tpu_custom_call.1} parent=1 // pred_check
      _
    $region27: #{tpu_custom_call.1} parent=1 // pred_check_branch
      %75 = sbr.rel (0) target = $region29
    $region28: #{tpu_custom_call.1} parent=1 // pred_region
      _
    $region29: #{tpu_custom_call.1} parent=1 // pred_fallthru
      _
    // Predicated region
    $region30: #{tpu_custom_call.1} parent=1 // pred_check
      _
    $region31: #{tpu_custom_call.1} parent=1 // pred_check_branch
      %77 = sbr.rel (0) target = $region33
    $region32: #{tpu_custom_call.1} parent=1 // pred_region
      %78 = dma.done [#allocation7], 1024
    $region33: #{tpu_custom_call.1} parent=1 // pred_fallthru
      _
    // Predicated region
    $region34: #{tpu_custom_call.1} parent=1 // pred_check
      _
    $region35: #{tpu_custom_call.1} parent=1 // pred_check_branch
      %80 = sbr.rel (0) target = $region37
    $region36: #{tpu_custom_call.1} parent=1 // pred_region
      %81 = dma.done [#allocation10], 1024
    $region37: #{tpu_custom_call.1} parent=1 // pred_fallthru
      _
    // Predicated region
    $region38: #{tpu_custom_call.1} parent=1 // pred_check
      _
    $region39: #{tpu_custom_call.1} parent=1 // pred_check_branch
      %83 = sbr.rel (0) target = $region41
    $region40: #{tpu_custom_call.1} parent=1 // pred_region
      %84 = dma.done [#allocation10], 1024
    $region41: #{tpu_custom_call.1} parent=1 // pred_fallthru
      _
    %s85 = sadd.s32 0, 0
    %s86 = sld [smem:[#allocation5 + %s85]]
    %p87 = scmp.lt.s32.totalorder %s86, 0
    %s88 = scalar_select %p87, %s86, 0
    %s89 = smul.addr %s88, 4
    %s90 = scalar_lea.vmem %s2, %s89
    %s91 = sadd.s32 0, 0
    %s92 = sld [smem:[#allocation5 + %s91]]
    %p93 = scmp.lt.s32.totalorder %s92, 0
    %s94 = scalar_select %p93, %s92, 0
    %s95 = smul.addr %s94, 4
    %s96 = scalar_lea.vmem %s2, %s95
    %s97 = sadd.s32 0, 0
    %s98 = sld [smem:[#allocation5 + %s97]]
    %s99 = sadd.s32 0, 0
    %s100 = sld [smem:[#allocation5 + %s99]]
    %s101 = smul.u32 16, %s100
    %p103 = scmp.eq.s32.totalorder 0, 0
    // Predicated region
    $region42: #{tpu_custom_call.1} parent=1 // pred_check
      %p104 = pneg %p103
    $region43: #{tpu_custom_call.1} parent=1 // pred_check_branch
      %106 = sbr.rel (%p104) target = $region45
    $region44: #{tpu_custom_call.1} parent=1 // pred_region
      %107 = vst [vmem:[#allocation2] sm:$0xff] 0.0
    $region45: #{tpu_custom_call.1} parent=1 // pred_fallthru
      _
    %s108 = sadd.s32 0, 0
    %s109 = sld [smem:[#allocation4 + %s108]]
    %p110 = scmp.gt.s32.totalorder %s109, 0
    // Predicated region
    $region46: #{tpu_custom_call.1} parent=1 // pred_check
      %p111 = pneg %p110
    $region47: #{tpu_custom_call.1} parent=1 // pred_check_branch
      %113 = sbr.rel (%p111) target = $region49
    $region48: #{tpu_custom_call.1} parent=1 // pred_region
      %v114 = vld [vmem:[#allocation2] sm:$0xff]
      %v115 = vld [vmem:[%s96] sm:$0xf]
      %v116 = vld [vmem:[#allocation6] sm:$0xf]
      %v117 = vld [vmem:[#allocation6 + $0x4] sm:$0xf]
      %v118 = vld [vmem:[#allocation6 + $0x8] sm:$0xf]
      %v119 = vld [vmem:[#allocation6 + $0xc] sm:$0xf]
      %v120 = vld [vmem:[#allocation6 + $0x10] sm:$0xf]
      %v121 = vld [vmem:[#allocation6 + $0x14] sm:$0xf]
      %v122 = vld [vmem:[#allocation6 + $0x18] sm:$0xf]
      %v123 = vld [vmem:[#allocation6 + $0x1c] sm:$0xf]
      %v124 = vld [vmem:[#allocation6 + $0x20] sm:$0xf]
      %v125 = vld [vmem:[#allocation6 + $0x24] sm:$0xf]
      %v126 = vld [vmem:[#allocation6 + $0x28] sm:$0xf]
      %v127 = vld [vmem:[#allocation6 + $0x2c] sm:$0xf]
      %v128 = vld [vmem:[#allocation6 + $0x30] sm:$0xf]
      %v129 = vld [vmem:[#allocation6 + $0x34] sm:$0xf]
      %v130 = vld [vmem:[#allocation6 + $0x38] sm:$0xf]
      %v131 = vld [vmem:[#allocation6 + $0x3c] sm:$0xf]
      %v148 = vunpack.c.l.b16 %v116
      %v149 = vunpack.c.l.b16 %v117
      %v150 = vunpack.c.l.b16 %v118
      %v151 = vunpack.c.l.b16 %v119
      %v152 = vunpack.c.l.b16 %v120
      %v153 = vunpack.c.l.b16 %v121
      %v154 = vunpack.c.l.b16 %v122
      %v155 = vunpack.c.l.b16 %v123
      %v156 = vunpack.c.l.b16 %v124
      %v157 = vunpack.c.l.b16 %v125
      %v158 = vunpack.c.l.b16 %v126
      %v159 = vunpack.c.l.b16 %v127
      %v160 = vunpack.c.l.b16 %v128
      %v161 = vunpack.c.l.b16 %v129
      %v162 = vunpack.c.l.b16 %v130
      %v163 = vunpack.c.l.b16 %v131
      %v164 = vpack.c.b16 %v149, %v148
      %v165 = vpack.c.b16 %v151, %v150
      %v166 = vpack.c.b16 %v153, %v152
      %v167 = vpack.c.b16 %v155, %v154
      %v168 = vpack.c.b16 %v157, %v156
      %v169 = vpack.c.b16 %v159, %v158
      %v170 = vpack.c.b16 %v161, %v160
      %v171 = vpack.c.b16 %v163, %v162
      %180 = vmatprep.subr.bf16.mxu0 0
      %181 = vmatpush1.bf16.msra.mxu0 %v164
      %182 = vmatprep.subr.bf16.mxu0 0
      %183 = vmatpush1.bf16.msra.mxu0 %v165
      %184 = vmatprep.subr.bf16.mxu0 0
      %185 = vmatpush1.bf16.msra.mxu0 %v166
      %186 = vmatprep.subr.bf16.mxu0 0
      %187 = vmatpush1.bf16.msra.mxu0 %v167
      %188 = vmatprep.subr.bf16.mxu0 0
      %189 = vmatpush1.bf16.msra.mxu0 %v168
      %190 = vmatprep.subr.bf16.mxu0 0
      %191 = vmatpush1.bf16.msra.mxu0 %v169
      %192 = vmatprep.subr.bf16.mxu0 0
      %193 = vmatpush1.bf16.msra.mxu0 %v170
      %194 = vmatprep.subr.bf16.mxu0 0
      %195 = vmatpush1.bf16.msra.mxu0 %v171
      %196 = vmatprep.subr.bf16.mxu0 0
      %197 = vmatpush1.bf16.msra.mxu0 0
      %198 = vmatprep.subr.bf16.mxu0 0
      %199 = vmatpush1.bf16.msra.mxu0 0
      %200 = vmatprep.subr.bf16.mxu0 0
      %201 = vmatpush1.bf16.msra.mxu0 0
      %202 = vmatprep.subr.bf16.mxu0 0
      %203 = vmatpush1.bf16.msra.mxu0 0
      %204 = vmatprep.subr.bf16.mxu0 0
      %205 = vmatpush1.bf16.msra.mxu0 0
      %206 = vmatprep.subr.bf16.mxu0 0
      %207 = vmatpush1.bf16.msra.mxu0 0
      %208 = vmatprep.subr.bf16.mxu0 0
      %209 = vmatpush1.bf16.msra.mxu0 0
      %210 = vmatprep.subr.bf16.mxu0 0
      %211 = vmatpush1.bf16.msra.mxu0 0
      %212 = vmatprep.mubr.bf16.mxu0 0
      %213 = vmatmul.mubr.bf16.gmra.mrb[0].mxu0 %v115
      %v214 = vpop.f32.mrb[0].mxu0
      %v215 = vadd.f32 0.0, %v214
      %v216 = vpop.f32.mrb[0].mxu0
      %v217 = vpop.f32.mrb[0].mxu0
      %v218 = vpop.f32.mrb[0].mxu0
      %219 = vdwg.mxu0
      %v220 = vadd.f32 %v114, %v215
      %221 = vst [vmem:[#allocation2] sm:$0xff] %v220
    $region49: #{tpu_custom_call.1} parent=1 // pred_fallthru
      _
    // Predicated region
    $region50: #{tpu_custom_call.1} parent=1 // pred_check
      %p222 = pneg %p103
    $region51: #{tpu_custom_call.1} parent=1 // pred_check_branch
      %224 = sbr.rel (%p222) target = $region53
    $region52: #{tpu_custom_call.1} parent=1 // pred_region
      %v225 = vld [vmem:[#allocation2] sm:$0xff]
      %v226 = vld [vmem:[%s8] sm:$0xff]
      %228 = vset.pattern.permute.xlu0 0
      %229 = vperm.xlu0 %228, %v226
      %v230 = vpop.permute.xlu0 %229
      %v232 = vmul.f32 %v225, %v230
      %v233 = vpack.c.bf16 %v232, %v232
      %v234 = vld [vmem:[#allocation9] sm:$0xf]
      %v235 = vld [vmem:[#allocation9 + $0x4] sm:$0xf]
      %v236 = vld [vmem:[#allocation9 + $0x8] sm:$0xf]
      %v237 = vld [vmem:[#allocation9 + $0xc] sm:$0xf]
      %v238 = vld [vmem:[#allocation9 + $0x10] sm:$0xf]
      %v239 = vld [vmem:[#allocation9 + $0x14] sm:$0xf]
      %v240 = vld [vmem:[#allocation9 + $0x18] sm:$0xf]
      %v241 = vld [vmem:[#allocation9 + $0x1c] sm:$0xf]
      %v242 = vld [vmem:[#allocation9 + $0x20] sm:$0xf]
      %v243 = vld [vmem:[#allocation9 + $0x24] sm:$0xf]
      %v244 = vld [vmem:[#allocation9 + $0x28] sm:$0xf]
      %v245 = vld [vmem:[#allocation9 + $0x2c] sm:$0xf]
      %v246 = vld [vmem:[#allocation9 + $0x30] sm:$0xf]
      %v247 = vld [vmem:[#allocation9 + $0x34] sm:$0xf]
      %v248 = vld [vmem:[#allocation9 + $0x38] sm:$0xf]
      %v249 = vld [vmem:[#allocation9 + $0x3c] sm:$0xf]
      %v250 = vld [vmem:[%s4] sm:$0xf]
      %v251 = vld [vmem:[#allocation11] sm:$0xf]
      %v252 = vld [vmem:[#allocation11 + $0x4] sm:$0xf]
      %v253 = vld [vmem:[#allocation11 + $0x8] sm:$0xf]
      %v254 = vld [vmem:[#allocation11 + $0xc] sm:$0xf]
      %v255 = vld [vmem:[#allocation11 + $0x10] sm:$0xf]
      %v256 = vld [vmem:[#allocation11 + $0x14] sm:$0xf]
      %v257 = vld [vmem:[#allocation11 + $0x18] sm:$0xf]
      %v258 = vld [vmem:[#allocation11 + $0x1c] sm:$0xf]
      %v259 = vld [vmem:[#allocation11 + $0x20] sm:$0xf]
      %v260 = vld [vmem:[#allocation11 + $0x24] sm:$0xf]
      %v261 = vld [vmem:[#allocation11 + $0x28] sm:$0xf]
      %v262 = vld [vmem:[#allocation11 + $0x2c] sm:$0xf]
      %v263 = vld [vmem:[#allocation11 + $0x30] sm:$0xf]
      %v264 = vld [vmem:[#allocation11 + $0x34] sm:$0xf]
      %v265 = vld [vmem:[#allocation11 + $0x38] sm:$0xf]
      %v266 = vld [vmem:[#allocation11 + $0x3c] sm:$0xf]
      %v283 = vunpack.c.l.b16 %v251
      %v284 = vunpack.c.l.b16 %v252
      %v285 = vunpack.c.l.b16 %v253
      %v286 = vunpack.c.l.b16 %v254
      %v287 = vunpack.c.l.b16 %v255
      %v288 = vunpack.c.l.b16 %v256
      %v289 = vunpack.c.l.b16 %v257
      %v290 = vunpack.c.l.b16 %v258
      %v291 = vunpack.c.l.b16 %v259
      %v292 = vunpack.c.l.b16 %v260
      %v293 = vunpack.c.l.b16 %v261
      %v294 = vunpack.c.l.b16 %v262
      %v295 = vunpack.c.l.b16 %v263
      %v296 = vunpack.c.l.b16 %v264
      %v297 = vunpack.c.l.b16 %v265
      %v298 = vunpack.c.l.b16 %v266
      %v299 = vpack.c.b16 %v284, %v283
      %v300 = vpack.c.b16 %v286, %v285
      %v301 = vpack.c.b16 %v288, %v287
      %v302 = vpack.c.b16 %v290, %v289
      %v303 = vpack.c.b16 %v292, %v291
      %v304 = vpack.c.b16 %v294, %v293
      %v305 = vpack.c.b16 %v296, %v295
      %v306 = vpack.c.b16 %v298, %v297
      %315 = vmatprep.subr.bf16.mxu0 0
      %316 = vmatpush1.bf16.msra.mxu0 %v299
      %317 = vmatprep.subr.bf16.mxu0 0
      %318 = vmatpush1.bf16.msra.mxu0 %v300
      %319 = vmatprep.subr.bf16.mxu0 0
      %320 = vmatpush1.bf16.msra.mxu0 %v301
      %321 = vmatprep.subr.bf16.mxu0 0
      %322 = vmatpush1.bf16.msra.mxu0 %v302
      %323 = vmatprep.subr.bf16.mxu0 0
      %324 = vmatpush1.bf16.msra.mxu0 %v303
      %325 = vmatprep.subr.bf16.mxu0 0
      %326 = vmatpush1.bf16.msra.mxu0 %v304
      %327 = vmatprep.subr.bf16.mxu0 0
      %328 = vmatpush1.bf16.msra.mxu0 %v305
      %329 = vmatprep.subr.bf16.mxu0 0
      %330 = vmatpush1.bf16.msra.mxu0 %v306
      %331 = vmatprep.subr.bf16.mxu0 0
      %332 = vmatpush1.bf16.msra.mxu0 0
      %333 = vmatprep.subr.bf16.mxu0 0
      %334 = vmatpush1.bf16.msra.mxu0 0
      %335 = vmatprep.subr.bf16.mxu0 0
      %336 = vmatpush1.bf16.msra.mxu0 0
      %337 = vmatprep.subr.bf16.mxu0 0
      %338 = vmatpush1.bf16.msra.mxu0 0
      %339 = vmatprep.subr.bf16.mxu0 0
      %340 = vmatpush1.bf16.msra.mxu0 0
      %341 = vmatprep.subr.bf16.mxu0 0
      %342 = vmatpush1.bf16.msra.mxu0 0
      %343 = vmatprep.subr.bf16.mxu0 0
      %344 = vmatpush1.bf16.msra.mxu0 0
      %345 = vmatprep.subr.bf16.mxu0 0
      %346 = vmatpush1.bf16.msra.mxu0 0
      %347 = vmatprep.mubr.bf16.mxu0 0
      %348 = vmatmul.mubr.bf16.gmra.mrb[0].mxu0 %v250
      %v349 = vpop.f32.mrb[0].mxu0
      %v350 = vadd.f32 0.0, %v349
      %v351 = vpop.f32.mrb[0].mxu0
      %v352 = vpop.f32.mrb[0].mxu0
      %v353 = vpop.f32.mrb[0].mxu0
      %354 = vdwg.mxu0
      %v371 = vunpack.c.l.b16 %v234
      %v372 = vunpack.c.l.b16 %v235
      %v373 = vunpack.c.l.b16 %v236
      %v374 = vunpack.c.l.b16 %v237
      %v375 = vunpack.c.l.b16 %v238
      %v376 = vunpack.c.l.b16 %v239
      %v377 = vunpack.c.l.b16 %v240
      %v378 = vunpack.c.l.b16 %v241
      %v379 = vunpack.c.l.b16 %v242
      %v380 = vunpack.c.l.b16 %v243
      %v381 = vunpack.c.l.b16 %v244
      %v382 = vunpack.c.l.b16 %v245
      %v383 = vunpack.c.l.b16 %v246
      %v384 = vunpack.c.l.b16 %v247
      %v385 = vunpack.c.l.b16 %v248
      %v386 = vunpack.c.l.b16 %v249
      %v387 = vpack.c.b16 %v372, %v371
      %v388 = vpack.c.b16 %v374, %v373
      %v389 = vpack.c.b16 %v376, %v375
      %v390 = vpack.c.b16 %v378, %v377
      %v391 = vpack.c.b16 %v380, %v379
      %v392 = vpack.c.b16 %v382, %v381
      %v393 = vpack.c.b16 %v384, %v383
      %v394 = vpack.c.b16 %v386, %v385
      %403 = vmatprep.subr.bf16.mxu0 0
      %404 = vmatpush1.bf16.msra.mxu0 %v387
      %405 = vmatprep.subr.bf16.mxu0 0
      %406 = vmatpush1.bf16.msra.mxu0 %v388
      %407 = vmatprep.subr.bf16.mxu0 0
      %408 = vmatpush1.bf16.msra.mxu0 %v389
      %409 = vmatprep.subr.bf16.mxu0 0
      %410 = vmatpush1.bf16.msra.mxu0 %v390
      %411 = vmatprep.subr.bf16.mxu0 0
      %412 = vmatpush1.bf16.msra.mxu0 %v391
      %413 = vmatprep.subr.bf16.mxu0 0
      %414 = vmatpush1.bf16.msra.mxu0 %v392
      %415 = vmatprep.subr.bf16.mxu0 0
      %416 = vmatpush1.bf16.msra.mxu0 %v393
      %417 = vmatprep.subr.bf16.mxu0 0
      %418 = vmatpush1.bf16.msra.mxu0 %v394
      %419 = vmatprep.subr.bf16.mxu0 0
      %420 = vmatpush1.bf16.msra.mxu0 0
      %421 = vmatprep.subr.bf16.mxu0 0
      %422 = vmatpush1.bf16.msra.mxu0 0
      %423 = vmatprep.subr.bf16.mxu0 0
      %424 = vmatpush1.bf16.msra.mxu0 0
      %425 = vmatprep.subr.bf16.mxu0 0
      %426 = vmatpush1.bf16.msra.mxu0 0
      %427 = vmatprep.subr.bf16.mxu0 0
      %428 = vmatpush1.bf16.msra.mxu0 0
      %429 = vmatprep.subr.bf16.mxu0 0
      %430 = vmatpush1.bf16.msra.mxu0 0
      %431 = vmatprep.subr.bf16.mxu0 0
      %432 = vmatpush1.bf16.msra.mxu0 0
      %433 = vmatprep.subr.bf16.mxu0 0
      %434 = vmatpush1.bf16.msra.mxu0 0
      %435 = vmatprep.mubr.bf16.mxu0 0
      %436 = vmatmul.mubr.bf16.gmra.mrb[0].mxu0 %v233
      %v437 = vpop.f32.mrb[0].mxu0
      %v438 = vadd.f32 %v350, %v437
      %v439 = vpop.f32.mrb[0].mxu0
      %v440 = vpop.f32.mrb[0].mxu0
      %v441 = vpop.f32.mrb[0].mxu0
      %442 = vdwg.mxu0
      %v443 = vld [vmem:[%s7] sm:$0x1]
      %v445 = vlaneseq
      %v446 = vshrl.u32 %v445, 7
      %v447 = vsub.s32 0, %v446
      %v448 = vrot.slane %v443, %v447
      %v450 = vadd.f32 %v438, %v448
      %v451 = vmax.f32 %v450, 0.0
      %v452 = vpack.c.bf16 %v451, %v451
      %453 = vst [vmem:[#allocation12] sm:$0xf] %v452
    $region53: #{tpu_custom_call.1} parent=1 // pred_fallthru
      _
    // Predicated region
    $region54: #{tpu_custom_call.1} parent=1 // pred_check
      _
    $region55: #{tpu_custom_call.1} parent=1 // pred_check_branch
      %455 = sbr.rel (0) target = $region57
    $region56: #{tpu_custom_call.1} parent=1 // pred_region
      %s457 = ssub.s32 64, 64
      %458 = vsyncadd [#allocation8], %s457
      %s460 = sshll.u32 [#allocation12], 4
      %s461 = int_to_ptr.vmem [resolvable:$true] %s460
      %463 = dma.vmem_to_hbm [thread:$0]  %s461, 64, %s9, [#allocation8]
    $region57: #{tpu_custom_call.1} parent=1 // pred_fallthru
      _
    // Predicated region
    $region58: #{tpu_custom_call.1} parent=1 // pred_check
      _
    $region59: #{tpu_custom_call.1} parent=1 // pred_check_branch
      %465 = sbr.rel (0) target = $region61
    $region60: #{tpu_custom_call.1} parent=1 // pred_region
      %466 = dma.done [#allocation8], 64
    $region61: #{tpu_custom_call.1} parent=1 // pred_fallthru
      _
    %467 = vsyncpa [#allocation7], 1
    %468 = vsyncpa [#allocation10], 1
    %469 = vsyncpa [#allocation8], 1

</llo_original>
